<compile_context>
chip_gen: v7x
topology: tpu7x:2x2x1
jax: 0.10.0
libtpu: 0.0.40
codegen_flags: <defaults>
</compile_context>

<pallas_src>
import functools

import jax
import jax.numpy as jnp
from jax.experimental import pallas as pl
from jax.experimental.pallas import tpu as pltpu


def _mean_pool_single_kernel(x_ref, o_ref, *, inv_t):
    # x_ref: (TB, T_pad, D) whole-T slab; o_ref: (TB, D)
    s = jnp.sum(x_ref[...].astype(jnp.float32), axis=1)
    o_ref[...] = (s * inv_t).astype(o_ref.dtype)


def _mean_pool_acc_kernel(x_ref, o_ref, acc_ref, *, inv_t):
    # x_ref:   (TB, TT, D) input chunk (source dtype)
    # o_ref:   (TB, D)     pooled output (source dtype), resident across T axis
    # acc_ref: (TB, D)     f32 scratch accumulator
    t = pl.program_id(1)

    @pl.when(t == 0)
    def _():
        acc_ref[...] = jnp.zeros_like(acc_ref)

    acc_ref[...] += jnp.sum(x_ref[...].astype(jnp.float32), axis=1)

    @pl.when(t == pl.num_programs(1) - 1)
    def _():
        o_ref[...] = (acc_ref[...] * inv_t).astype(o_ref.dtype)


def _round_up(x, m):
    return (x + m - 1) // m * m


def simple_pooler_mean(xs, xs_len, *, per_buffer_bytes=4 * 1024 * 1024):
    """Mean-pool xs over axis=1 with a Pallas kernel; pass xs_len through."""
    B, T, D = xs.shape
    dtype_bytes = jnp.dtype(xs.dtype).itemsize

    # ---- tile sizing ---------------------------------------------------
    T8 = _round_up(T, 8)
    row_bytes = max(1, T8 * D * dtype_bytes)  # one (1, T8, D) slab

    if 8 * row_bytes <= per_buffer_bytes:
        # Whole T in one chunk; grow the batch tile to fill the byte budget.
        TB = (per_buffer_bytes // row_bytes) // 8 * 8
        TB = max(8, min(TB, 1024, _round_up(B, 8)))
        TT = T8
    else:
        # T too large for one slab even at TB=8: chunk T and accumulate.
        TB = 8
        tt = per_buffer_bytes // max(1, TB * D * dtype_bytes)
        TT = max(8, (tt // 8) * 8)
        TT = min(TT, T8)

    B_pad = _round_up(B, TB)
    T_pad = _round_up(T, TT)

    # ---- pad to tile multiples (zeros don't perturb the sum) -----------
    pad_b = B_pad - B
    pad_t = T_pad - T
    xs_p = jnp.pad(xs, ((0, pad_b), (0, pad_t), (0, 0))) if (pad_b or pad_t) else xs

    inv_t = 1.0 / T
    vmem_cap = 32 * 1024 * 1024

    if T_pad == TT:
        # Single-pass path: one grid axis, no scratch, no accumulator loop.
        pooled = pl.pallas_call(
            functools.partial(_mean_pool_single_kernel, inv_t=inv_t),
            out_shape=jax.ShapeDtypeStruct((B_pad, D), xs.dtype),
            grid_spec=pltpu.PrefetchScalarGridSpec(
                num_scalar_prefetch=0,
                grid=(B_pad // TB,),
                in_specs=[pl.BlockSpec((TB, TT, D), lambda b: (b, 0, 0))],
                out_specs=pl.BlockSpec((TB, D), lambda b: (b, 0)),
            ),
            compiler_params=pltpu.CompilerParams(
                dimension_semantics=("parallel",),
                vmem_limit_bytes=vmem_cap,
            ),
        )(xs_p)
    else:
        # Accumulating path: T chunked on the last ('arbitrary') grid axis.
        pooled = pl.pallas_call(
            functools.partial(_mean_pool_acc_kernel, inv_t=inv_t),
            out_shape=jax.ShapeDtypeStruct((B_pad, D), xs.dtype),
            grid_spec=pltpu.PrefetchScalarGridSpec(
                num_scalar_prefetch=0,
                grid=(B_pad // TB, T_pad // TT),
                in_specs=[pl.BlockSpec((TB, TT, D), lambda b, t: (b, t, 0))],
                out_specs=pl.BlockSpec((TB, D), lambda b, t: (b, 0)),
                scratch_shapes=[pltpu.VMEM((TB, D), jnp.float32)],
            ),
            compiler_params=pltpu.CompilerParams(
                dimension_semantics=("parallel", "arbitrary"),
                vmem_limit_bytes=vmem_cap,
            ),
        )(xs_p)

    return pooled[:B], xs_len


if __name__ == "__main__":
    key = jax.random.PRNGKey(0)

    # --- primary check: shapes implied by the module (B=2, T=8, D=32) ----
    B, T, D = 2, 8, 32
    k1, k2 = jax.random.split(key)
    xs = jax.random.normal(k1, (B, T, D), dtype=jnp.float32)
    xs_len = jnp.full((B,), T, dtype=jnp.int32)

    pooled, out_len = simple_pooler_mean(xs, xs_len)
    jax.block_until_ready(pooled)
    jax.block_until_ready(out_len)

    ref = jnp.mean(xs, axis=1)
    assert pooled.shape == (B, D)
    assert out_len.shape == (B,)
    assert jnp.allclose(pooled, ref, atol=1e-5, rtol=1e-5)
    assert jnp.array_equal(out_len, xs_len)

    # --- secondary check: exercise the T-chunked accumulator path --------
    B2, T2, D2 = 4, 32, 16
    xs2 = jax.random.normal(k2, (B2, T2, D2), dtype=jnp.float32)
    xs_len2 = jnp.full((B2,), T2, dtype=jnp.int32)
    pooled2, out_len2 = simple_pooler_mean(xs2, xs_len2, per_buffer_bytes=2048)
    jax.block_until_ready(pooled2)
    ref2 = jnp.mean(xs2, axis=1)
    assert jnp.allclose(pooled2, ref2, atol=1e-5, rtol=1e-5)
    assert jnp.array_equal(out_len2, xs_len2)

    print("KERNEL_OK")
</pallas_src>

<mosaic_0001>
module attributes {stable_mosaic.version = 11 : i64} {
  func.func @_mean_pool_single_kernel(%arg0: i32, %arg1: memref<8x8x32xf32, #tpu.memory_space<vmem>>, %arg2: memref<8x32xf32, #tpu.memory_space<vmem>>) attributes {dimension_semantics = [#tpu.dimension_semantics<parallel>], iteration_bounds = array<i64: 1>, scalar_prefetch = 0 : i64, scratch_operands = 0 : i64, tpu.core_type = #tpu.core_type<tc>, window_params = [{transform_indices = @transform_0, window_bounds = array<i64: 8, 8, 32>}, {transform_indices = @transform_1, window_bounds = array<i64: 8, 32>}]} {
    %c0 = arith.constant 0 : index
    %c0_0 = arith.constant 0 : index
    %c0_1 = arith.constant 0 : index
    %0 = vector.load %arg1[%c0, %c0_0, %c0_1] : memref<8x8x32xf32, #tpu.memory_space<vmem>>, vector<8x8x32xf32>
    %cst = arith.constant dense<0.000000e+00> : vector<8x32xf32>
    %1 = vector.multi_reduction <add>, %0, %cst [1] : vector<8x8x32xf32> to vector<8x32xf32>
    %cst_2 = arith.constant 1.250000e-01 : f32
    %2 = vector.broadcast %cst_2 : f32 to vector<8x32xf32>
    %3 = arith.mulf %1, %2 : vector<8x32xf32>
    %c0_3 = arith.constant 0 : index
    %c0_4 = arith.constant 0 : index
    %4 = vector.load %arg2[%c0_3, %c0_4] : memref<8x32xf32, #tpu.memory_space<vmem>>, vector<8x32xf32>
    tpu.vector_store %arg2[%c0_3, %c0_4], %3 {strides = array<i32>} : memref<8x32xf32, #tpu.memory_space<vmem>>, vector<8x32xf32>,
    return
  }
  func.func @transform_0(%arg0: i32) -> (i32, i32, i32) {
    %c0_i32 = arith.constant 0 : i32
    %c0_i32_0 = arith.constant 0 : i32
    %c0_i32_1 = arith.constant 0 : i32
    return %arg0, %c0_i32, %c0_i32_0 : i32, i32, i32
  }
  func.func @transform_1(%arg0: i32) -> (i32, i32) {
    %c0_i32 = arith.constant 0 : i32
    %c0_i32_0 = arith.constant 0 : i32
    return %arg0, %c0_i32 : i32, i32
  }
}

</mosaic_0001>

<llo_original>
// kernel: tpu_custom_call.1
$region0: #{tpu_custom_call.1}
  #allocation0 [shape = 'u32[]', space=smem, size = 0x4, offset = 0x4, fixed_abs, tag = 'smem constant byte address 0x4 - core index']
  #allocation1 [shape = 'u32[144,128]{1,0:T(1,128)}', space=vmem, size = 0x12000, scoped, tag = 'internal scratch']
  %s0 = inlined_call_operand.hbm [shape: f32[8,8,32], index: 0, kind: input, shape index: {}]
  %s1 = inlined_call_operand.hbm [shape: f32[8,32], index: 1, kind: output, shape index: {}]
  %s2 = sld [smem:[#allocation0]]
  $region18: #{tpu_custom_call.1} parent=0
    _
  %s4 = ssub.s32 1, %s2
  %s5 = scalar_select 0, %s4, %s2
  $region1: #{tpu_custom_call.1} parent=0
    #allocation2 [shape = 'u8[32768]{0}', space=vmem, size = 0x8000, scoped, tag = 'input window, operand 0, single buffered']
    #allocation3 [shape = 's32[1]{0}', space=sflag, size = 0x4, scoped, tag = 'scoped memory for tpu_custom_call.1']
    #allocation4 [shape = 's32[1]{0}', space=sflag, size = 0x4, scoped, tag = 'scoped memory for tpu_custom_call.1']
    #allocation5 [shape = 'u8[4096]{0}', space=vmem, size = 0x1000, scoped, tag = 'output window, operand 0, single buffered']
    %6 = vsyncpa [#allocation3], 0
    %7 = vsyncpa [#allocation4], 0
    // Predicated region
    $region2: #{tpu_custom_call.1} parent=1 // pred_check
      _
    $region3: #{tpu_custom_call.1} parent=1 // pred_check_branch
      %9 = sbr.rel (0) target = $region5
    $region4: #{tpu_custom_call.1} parent=1 // pred_region
      %s11 = ssub.s32 1024, 1024
      %12 = vsyncadd [#allocation3], %s11
      %s13 = sshll.u32 [#allocation2], 4
      %s14 = int_to_ptr.vmem [resolvable:$true] %s13
      %19 = dma.hbm_to_vmem [thread:$0]  %s0, 1024, %s14, [#allocation3], 128, 128, 8
    $region5: #{tpu_custom_call.1} parent=1 // pred_fallthru
      _
    // Predicated region
    $region6: #{tpu_custom_call.1} parent=1 // pred_check
      _
    $region7: #{tpu_custom_call.1} parent=1 // pred_check_branch
      %21 = sbr.rel (0) target = $region9
    $region8: #{tpu_custom_call.1} parent=1 // pred_region
      %22 = dma.done [#allocation3], 1024
    $region9: #{tpu_custom_call.1} parent=1 // pred_fallthru
      _
    %v23 = vld [vmem:[#allocation2] sm:$0xff]
    %v24 = vld [vmem:[#allocation2 + $0x8] sm:$0xff]
    %v25 = vld [vmem:[#allocation2 + $0x10] sm:$0xff]
    %v26 = vld [vmem:[#allocation2 + $0x18] sm:$0xff]
    %v27 = vld [vmem:[#allocation2 + $0x20] sm:$0xff]
    %v28 = vld [vmem:[#allocation2 + $0x28] sm:$0xff]
    %v29 = vld [vmem:[#allocation2 + $0x30] sm:$0xff]
    %v30 = vld [vmem:[#allocation2 + $0x38] sm:$0xff]
    %vm31 = vcmask 261120
    %v32 = vsel %vm31, %v23, 0.0
    %v33 = vrot.slane %v32, 4
    %v34 = vadd.f32 %v32, %v33
    %v35 = vrot.slane %v34, 2
    %v36 = vadd.f32 %v34, %v35
    %v37 = vrot.slane %v36, 1
    %v38 = vadd.f32 %v36, %v37
    %v39 = vsel %vm31, %v24, 0.0
    %v40 = vrot.slane %v39, 4
    %v41 = vadd.f32 %v39, %v40
    %v42 = vrot.slane %v41, 2
    %v43 = vadd.f32 %v41, %v42
    %v44 = vrot.slane %v43, 1
    %v45 = vadd.f32 %v43, %v44
    %v46 = vsel %vm31, %v25, 0.0
    %v47 = vrot.slane %v46, 4
    %v48 = vadd.f32 %v46, %v47
    %v49 = vrot.slane %v48, 2
    %v50 = vadd.f32 %v48, %v49
    %v51 = vrot.slane %v50, 1
    %v52 = vadd.f32 %v50, %v51
    %v53 = vsel %vm31, %v26, 0.0
    %v54 = vrot.slane %v53, 4
    %v55 = vadd.f32 %v53, %v54
    %v56 = vrot.slane %v55, 2
    %v57 = vadd.f32 %v55, %v56
    %v58 = vrot.slane %v57, 1
    %v59 = vadd.f32 %v57, %v58
    %v60 = vsel %vm31, %v27, 0.0
    %v61 = vrot.slane %v60, 4
    %v62 = vadd.f32 %v60, %v61
    %v63 = vrot.slane %v62, 2
    %v64 = vadd.f32 %v62, %v63
    %v65 = vrot.slane %v64, 1
    %v66 = vadd.f32 %v64, %v65
    %v67 = vsel %vm31, %v28, 0.0
    %v68 = vrot.slane %v67, 4
    %v69 = vadd.f32 %v67, %v68
    %v70 = vrot.slane %v69, 2
    %v71 = vadd.f32 %v69, %v70
    %v72 = vrot.slane %v71, 1
    %v73 = vadd.f32 %v71, %v72
    %v74 = vsel %vm31, %v29, 0.0
    %v75 = vrot.slane %v74, 4
    %v76 = vadd.f32 %v74, %v75
    %v77 = vrot.slane %v76, 2
    %v78 = vadd.f32 %v76, %v77
    %v79 = vrot.slane %v78, 1
    %v80 = vadd.f32 %v78, %v79
    %v81 = vsel %vm31, %v30, 0.0
    %v82 = vrot.slane %v81, 4
    %v83 = vadd.f32 %v81, %v82
    %v84 = vrot.slane %v83, 2
    %v85 = vadd.f32 %v83, %v84
    %v86 = vrot.slane %v85, 1
    %v87 = vadd.f32 %v85, %v86
    %v88 = vmul.f32 %v38, 0.125
    %v89 = vmul.f32 %v45, 0.125
    %v90 = vmul.f32 %v52, 0.125
    %v91 = vmul.f32 %v59, 0.125
    %v92 = vmul.f32 %v66, 0.125
    %v93 = vmul.f32 %v73, 0.125
    %v94 = vmul.f32 %v80, 0.125
    %v95 = vmul.f32 %v87, 0.125
    %vm104 = vcmask 1041409
    %v105 = vsel %vm104, %v89, %v88
    %vm106 = vcmask 1042434
    %v107 = vsel %vm106, %v90, %v105
    %vm108 = vcmask 1043459
    %v109 = vsel %vm108, %v91, %v107
    %vm110 = vcmask 1044484
    %v111 = vsel %vm110, %v92, %v109
    %vm112 = vcmask 1045509
    %v113 = vsel %vm112, %v93, %v111
    %vm114 = vcmask 1046534
    %v115 = vsel %vm114, %v94, %v113
    %vm116 = vcmask 1047559
    %v117 = vsel %vm116, %v95, %v115
    %119 = vst.msk [vmem:[#allocation5] sm:$0xff] %vm31, %v117
    // Predicated region
    $region10: #{tpu_custom_call.1} parent=1 // pred_check
      _
    $region11: #{tpu_custom_call.1} parent=1 // pred_check_branch
      %121 = sbr.rel (0) target = $region13
    $region12: #{tpu_custom_call.1} parent=1 // pred_region
      %s123 = ssub.s32 128, 128
      %124 = vsyncadd [#allocation4], %s123
      %s126 = sshll.u32 [#allocation5], 4
      %s127 = int_to_ptr.vmem [resolvable:$true] %s126
      %129 = dma.vmem_to_hbm [thread:$0]  %s127, 128, %s1, [#allocation4]
    $region13: #{tpu_custom_call.1} parent=1 // pred_fallthru
      _
    // Predicated region
    $region14: #{tpu_custom_call.1} parent=1 // pred_check
      _
    $region15: #{tpu_custom_call.1} parent=1 // pred_check_branch
      %131 = sbr.rel (0) target = $region17
    $region16: #{tpu_custom_call.1} parent=1 // pred_region
      %132 = dma.done [#allocation4], 128
    $region17: #{tpu_custom_call.1} parent=1 // pred_fallthru
      _
    %133 = vsyncpa [#allocation3], 1
    %134 = vsyncpa [#allocation4], 1

</llo_original>
